<compile_context>
chip_gen: v6e
topology: v6e:2x2x1
jax: 0.10.0
libtpu: 0.0.40
codegen_flags: <defaults>
</compile_context>

<pallas_src>
import functools

import jax
import jax.numpy as jnp
from jax.experimental import pallas as pl
from jax.experimental.pallas import tpu as pltpu


def _round_up(v, m):
    return (v + m - 1) // m * m


# ----------------------------------------------------------------------------
# Pallas kernel: entire decoder step (widden -> attn -> combine -> LSTM -> out)
# ----------------------------------------------------------------------------
def _decoder_attn_lstm_kernel(
    w_ref,        # (R, LANE)  packed params (see pack_decoder_params)
    x_ref,        # (B, OUT)
    h_ref,        # (L, B, H)
    c_ref,        # (L, B, H)
    enc_ref,      # (B, S, H)
    y_ref,        # (B, OUT_PAD)   lane-dense output (first OUT lanes valid)
    h_new_ref,    # (L, B, H)      aliased onto h input
    c_new_ref,    # (L, B, H)      aliased onto c input
    cat_ref,      # (B, 3H)        VMEM scratch used to build fused operands
    *, offs, H, S, OUT, L, OUT_PAD,
):
    f32 = jnp.float32

    def blk(name, rows, cols):
        o = offs[name]
        return w_ref[o:o + rows, 0:cols]

    # x = self.widden(x)
    xw = (jnp.dot(x_ref[...], blk("widden_w", OUT, H), preferred_element_type=f32)
          + blk("widden_b", 1, H))                                    # (B, H)

    # fused attention matmul over cat(xw, last_state, last_cell): (B,3H)@(3H,S)
    cat_ref[:, 0:H] = xw
    cat_ref[:, H:2 * H] = h_ref[L - 1]
    cat_ref[:, 2 * H:3 * H] = c_ref[L - 1]
    logits = (jnp.dot(cat_ref[...], blk("attn_w", 3 * H, S),
                      preferred_element_type=f32)
              + blk("attn_b", 1, S))                                  # (B, S)

    # softmax over seq_len; divide goes to the EUP via approx reciprocal
    m = jnp.max(logits, axis=-1, keepdims=True)
    e = jnp.exp(logits - m)
    attn_p = e * pl.reciprocal(jnp.sum(e, axis=-1, keepdims=True), approx=True)

    # bmm on the MXU: (B,1,S) @ (B,S,H) -> (B,H)
    attn_applied = jax.lax.dot_general(
        attn_p.reshape(attn_p.shape[0], 1, S), enc_ref[...],
        dimension_numbers=(((2,), (1,)), ((0,), (0,))),
        preferred_element_type=f32)[:, 0, :]                          # (B, H)

    # fused attn_combine over cat(xw, attn_applied); xw already sits at [0:H)
    cat_ref[:, H:2 * H] = attn_applied
    combined = (jnp.dot(cat_ref[:, 0:2 * H], blk("comb_w", 2 * H, H),
                        preferred_element_type=f32)
                + blk("comb_b", 1, H))
    inp = jnp.maximum(combined, 0.0)                                  # relu

    # multi-layer LSTM, seq len 1, PyTorch gate order (i, f, g, o).
    # One fused (B,2H)@(2H,4H) matmul per layer; one full-width sigmoid.
    lstm_w_off = offs["lstm_w"]
    lstm_b_off = offs["lstm_b"]
    for l in range(L):
        cat_ref[:, 0:H] = inp
        cat_ref[:, H:2 * H] = h_ref[l]
        w_l = w_ref[lstm_w_off + l * 2 * H: lstm_w_off + (l + 1) * 2 * H, 0:4 * H]
        b_l = w_ref[lstm_b_off + l: lstm_b_off + l + 1, 0:4 * H]
        gates = (jnp.dot(cat_ref[:, 0:2 * H], w_l, preferred_element_type=f32)
                 + b_l)                                               # (B, 4H)
        sig = jax.nn.sigmoid(gates)          # full-width EUP pass (i, f, o used)
        g_g = jnp.tanh(gates[:, 2 * H:3 * H])
        c_new = sig[:, H:2 * H] * c_ref[l] + sig[:, 0:H] * g_g
        h_new = sig[:, 3 * H:4 * H] * jnp.tanh(c_new)
        h_new_ref[l] = h_new
        c_new_ref[l] = c_new
        inp = h_new

    # output = self.out(lstm_output); out_w/out_b are lane-padded to OUT_PAD so
    # this store is lane-dense (padded lanes are exact zeros, sliced off outside)
    y_ref[...] = (jnp.dot(inp, blk("out_w", H, OUT_PAD), preferred_element_type=f32)
                  + blk("out_b", 1, OUT_PAD))


# ----------------------------------------------------------------------------
# One-time (model-load) parameter packing: transposes, splits and padding are
# hoisted OUT of the per-step decode jit.  Everything lands in one contiguous
# (R, LANE) f32 buffer -> a single HBM->VMEM DMA per decode step.
# ----------------------------------------------------------------------------
def pack_decoder_params(params, *, out_size, hidden_size, num_layers, seq_len):
    H, S, OUT, L = hidden_size, seq_len, out_size, num_layers
    out_pad = _round_up(OUT, 128)

    blocks = []
    blocks.append(("widden_w", params["widden_w"].T))                  # (OUT, H)
    blocks.append(("widden_b", params["widden_b"][None, :]))           # (1, H)
    blocks.append(("attn_w", params["attn_w"].T))                      # (3H, S)
    blocks.append(("attn_b", params["attn_b"][None, :]))               # (1, S)
    blocks.append(("comb_w", params["comb_w"].T))                      # (2H, H)
    blocks.append(("comb_b", params["comb_b"][None, :]))               # (1, H)
    # LSTM: [W_ih^T ; W_hh^T] stacked along the input dim -> (L*2H, 4H)
    w_ih_t = jnp.transpose(params["lstm_w_ih"], (0, 2, 1))             # (L, H, 4H)
    w_hh_t = jnp.transpose(params["lstm_w_hh"], (0, 2, 1))             # (L, H, 4H)
    lstm_w = jnp.concatenate([w_ih_t, w_hh_t], axis=1).reshape(L * 2 * H, 4 * H)
    blocks.append(("lstm_w", lstm_w))
    blocks.append(("lstm_b", params["lstm_b_ih"] + params["lstm_b_hh"]))  # (L, 4H)
    # output projection: lane-pad to out_pad so the kernel store is lane-dense
    out_w = jnp.zeros((H, out_pad), jnp.float32).at[:, :OUT].set(params["out_w"].T)
    out_b = jnp.zeros((1, out_pad), jnp.float32).at[:, :OUT].set(params["out_b"][None, :])
    blocks.append(("out_w", out_w))
    blocks.append(("out_b", out_b))

    lane_w = _round_up(max(int(b.shape[1]) for _, b in blocks), 128)
    offs = {}
    padded_rows = []
    r = 0
    for name, b in blocks:
        nrows = _round_up(int(b.shape[0]), 8)
        pad = jnp.zeros((nrows, lane_w), jnp.float32)
        pad = pad.at[: b.shape[0], : b.shape[1]].set(b.astype(jnp.float32))
        offs[name] = r
        padded_rows.append(pad)
        r += nrows
    packed = jnp.concatenate(padded_rows, axis=0)                      # (R, lane_w)
    return packed, offs, out_pad


# ----------------------------------------------------------------------------
# Per-step wrapper (this is what gets jitted in the decode loop)
# ----------------------------------------------------------------------------
def decoder_attention_lstm_step(packed, x, hidden, encoder_outputs, *,
                                offs, out_size, hidden_size, num_layers,
                                seq_len, out_pad):
    """Matches decoderAttentionLSTM.forward.

    x: (B, 1, OUT); hidden: ((L,B,H), (L,B,H)); encoder_outputs: (B, S, H).
    Returns (output (B,1,OUT), hidden, (h_new, c_new)) -- torch returns the
    *input* hidden; the updated LSTM state is the third element.
    """
    h0, c0 = hidden
    L, B, H = h0.shape
    x2d = x.reshape(B, out_size)

    kernel_fn = functools.partial(
        _decoder_attn_lstm_kernel, offs=offs, H=hidden_size, S=seq_len,
        OUT=out_size, L=num_layers, OUT_PAD=out_pad)

    vmem = pl.BlockSpec(memory_space=pltpu.MemorySpace.VMEM)
    # TODO(synk): add a "parallel" batch grid axis (dimension_semantics) to use
    #             v7x's second TensorCore once B is large enough to tile by 8.
    # TODO(synk): tile encoder_outputs over S with a BlockSpec (online softmax)
    #             when B*S*H no longer fits v7x's 64 MiB VMEM.
    # TODO(synk): optional bf16 cast of MXU operands (f32 accumulation) if the
    #             accuracy budget allows.
    call = pl.pallas_call(
        kernel_fn,
        out_shape=(
            jax.ShapeDtypeStruct((B, out_pad), jnp.float32),
            jax.ShapeDtypeStruct((L, B, H), jnp.float32),
            jax.ShapeDtypeStruct((L, B, H), jnp.float32),
        ),
        in_specs=[vmem] * 5,
        out_specs=(vmem, vmem, vmem),
        scratch_shapes=[pltpu.VMEM((B, 3 * hidden_size), jnp.float32)],
        input_output_aliases={2: 1, 3: 2},   # h0 -> h_new, c0 -> c_new in place
    )
    y_pad, h_new, c_new = call(packed, x2d, h0, c0, encoder_outputs)
    output = y_pad[:, :out_size].reshape(B, 1, out_size)
    return output, hidden, (h_new, c_new)


# ----------------------------------------------------------------------------
# Pure-JAX reference (mirrors the torch code) for a correctness check
# ----------------------------------------------------------------------------
def _reference_forward(x, hidden, encoder_outputs, params):
    h0, c0 = hidden
    L, B, H = h0.shape
    xw = x.reshape(B, -1) @ params["widden_w"].T + params["widden_b"]
    cat3 = jnp.concatenate([xw, h0[-1], c0[-1]], axis=-1)
    logits = cat3 @ params["attn_w"].T + params["attn_b"]
    aw = jax.nn.softmax(logits, axis=-1)
    applied = jnp.einsum("bs,bsh->bh", aw, encoder_outputs)
    comb = jnp.concatenate([xw, applied], axis=-1) @ params["comb_w"].T + params["comb_b"]
    inp = jnp.maximum(comb, 0.0)
    h_list, c_list = [], []
    for l in range(L):
        gates = (inp @ params["lstm_w_ih"][l].T + params["lstm_b_ih"][l]
                 + h0[l] @ params["lstm_w_hh"][l].T + params["lstm_b_hh"][l])
        i_g = jax.nn.sigmoid(gates[:, 0 * H:1 * H])
        f_g = jax.nn.sigmoid(gates[:, 1 * H:2 * H])
        g_g = jnp.tanh(gates[:, 2 * H:3 * H])
        o_g = jax.nn.sigmoid(gates[:, 3 * H:4 * H])
        c_new = f_g * c0[l] + i_g * g_g
        h_new = o_g * jnp.tanh(c_new)
        h_list.append(h_new)
        c_list.append(c_new)
        inp = h_new
    y = inp @ params["out_w"].T + params["out_b"]
    return y.reshape(B, 1, -1), (jnp.stack(h_list), jnp.stack(c_list))


# ----------------------------------------------------------------------------
# Main
# ----------------------------------------------------------------------------
if __name__ == "__main__":
    OUT, H, L, B, S = 4, 32, 2, 2, 8

    key = jax.random.PRNGKey(0)
    ks = jax.random.split(key, 16)
    scale = 0.1
    params = {
        "attn_w": scale * jax.random.normal(ks[0], (S, 3 * H), jnp.float32),
        "attn_b": scale * jax.random.normal(ks[1], (S,), jnp.float32),
        "widden_w": scale * jax.random.normal(ks[2], (H, OUT), jnp.float32),
        "widden_b": scale * jax.random.normal(ks[3], (H,), jnp.float32),
        "comb_w": scale * jax.random.normal(ks[4], (H, 2 * H), jnp.float32),
        "comb_b": scale * jax.random.normal(ks[5], (H,), jnp.float32),
        "lstm_w_ih": scale * jax.random.normal(ks[6], (L, 4 * H, H), jnp.float32),
        "lstm_w_hh": scale * jax.random.normal(ks[7], (L, 4 * H, H), jnp.float32),
        "lstm_b_ih": scale * jax.random.normal(ks[8], (L, 4 * H), jnp.float32),
        "lstm_b_hh": scale * jax.random.normal(ks[9], (L, 4 * H), jnp.float32),
        "out_w": scale * jax.random.normal(ks[10], (OUT, H), jnp.float32),
        "out_b": scale * jax.random.normal(ks[11], (OUT,), jnp.float32),
    }

    x = jax.random.normal(ks[12], (B, 1, OUT), jnp.float32)
    h0 = jax.random.normal(ks[13], (L, B, H), jnp.float32)
    c0 = jax.random.normal(ks[14], (L, B, H), jnp.float32)
    encoder_outputs = jax.random.normal(ks[15], (B, S, H), jnp.float32)

    # one-time (model-load) packing -- hoisted out of the per-step jit
    packed, offs, out_pad = pack_decoder_params(
        params, out_size=OUT, hidden_size=H, num_layers=L, seq_len=S)
    packed = jax.block_until_ready(packed)

    step = jax.jit(functools.partial(
        decoder_attention_lstm_step,
        offs=offs, out_size=OUT, hidden_size=H, num_layers=L, seq_len=S,
        out_pad=out_pad))

    output, hidden_ret, (h_new, c_new) = step(packed, x, (h0, c0), encoder_outputs)
    jax.block_until_ready(output)
    jax.block_until_ready(h_new)
    jax.block_until_ready(c_new)

    # correctness check against a pure-JAX reference of the torch forward
    # (tolerance relaxed to cover the approximate EUP reciprocal in softmax)
    ref_y, (ref_h, ref_c) = _reference_forward(x, (h0, c0), encoder_outputs, params)
    assert output.shape == (B, 1, OUT)
    assert jnp.allclose(output, ref_y, atol=1e-3, rtol=1e-3)
    assert jnp.allclose(h_new, ref_h, atol=1e-3, rtol=1e-3)
    assert jnp.allclose(c_new, ref_c, atol=1e-3, rtol=1e-3)

    print("KERNEL_OK")
</pallas_src>

<mosaic_0001>
module attributes {stable_mosaic.version = 11 : i64} {
  func.func @_decoder_attn_lstm_kernel(%arg0: memref<368x128xf32, #tpu.memory_space<vmem>>, %arg1: memref<2x4xf32, #tpu.memory_space<vmem>>, %arg2: memref<2x2x32xf32, #tpu.memory_space<vmem>>, %arg3: memref<2x2x32xf32, #tpu.memory_space<vmem>>, %arg4: memref<2x8x32xf32, #tpu.memory_space<vmem>>, %arg5: memref<2x128xf32, #tpu.memory_space<vmem>>, %arg6: memref<2x2x32xf32, #tpu.memory_space<vmem>>, %arg7: memref<2x2x32xf32, #tpu.memory_space<vmem>>, %arg8: memref<2x96xf32, #tpu.memory_space<vmem>>) attributes {dimension_semantics = [], scalar_prefetch = 0 : i64, scratch_operands = 1 : i64, tpu.core_type = #tpu.core_type<tc>} {
    %c0 = arith.constant 0 : index
    %c0_0 = arith.constant 0 : index
    %0 = vector.load %arg1[%c0, %c0_0] : memref<2x4xf32, #tpu.memory_space<vmem>>, vector<2x4xf32>
    %c0_1 = arith.constant 0 : index
    %c0_2 = arith.constant 0 : index
    %1 = vector.load %arg0[%c0_1, %c0_2] : memref<368x128xf32, #tpu.memory_space<vmem>>, vector<4x32xf32>
    %cst = arith.constant dense<0.000000e+00> : vector<2x32xf32>
    %2 = tpu.matmul %0, %1, %cst {dimension_numbers = #tpu.dot_dimension_numbers<[1], [0], [0], [1], [0, 0, 1, 1], [], []>} : vector<2x4xf32>, vector<4x32xf32>, vector<2x32xf32> -> vector<2x32xf32>
    %c8 = arith.constant 8 : index
    %c0_3 = arith.constant 0 : index
    %3 = vector.load %arg0[%c8, %c0_3] : memref<368x128xf32, #tpu.memory_space<vmem>>, vector<1x32xf32>
    %4 = vector.broadcast %3 : vector<1x32xf32> to vector<2x32xf32>
    %5 = arith.addf %2, %4 : vector<2x32xf32>
    %c0_4 = arith.constant 0 : index
    %c0_5 = arith.constant 0 : index
    %6 = vector.load %arg8[%c0_4, %c0_5] : memref<2x96xf32, #tpu.memory_space<vmem>>, vector<2x32xf32>
    tpu.vector_store %arg8[%c0_4, %c0_5], %5 {strides = array<i32>} : memref<2x96xf32, #tpu.memory_space<vmem>>, vector<2x32xf32>,
    %c1 = arith.constant 1 : index
    %c0_6 = arith.constant 0 : index
    %c0_7 = arith.constant 0 : index
    %7 = vector.load %arg2[%c1, %c0_6, %c0_7] : memref<2x2x32xf32, #tpu.memory_space<vmem>>, vector<1x2x32xf32>
    %8 = vector.shape_cast %7 : vector<1x2x32xf32> to vector<2x32xf32>
    %c0_8 = arith.constant 0 : index
    %c32 = arith.constant 32 : index
    %9 = vector.load %arg8[%c0_8, %c32] : memref<2x96xf32, #tpu.memory_space<vmem>>, vector<2x32xf32>
    tpu.vector_store %arg8[%c0_8, %c32], %8 {strides = array<i32>} : memref<2x96xf32, #tpu.memory_space<vmem>>, vector<2x32xf32>,
    %c1_9 = arith.constant 1 : index
    %c0_10 = arith.constant 0 : index
    %c0_11 = arith.constant 0 : index
    %10 = vector.load %arg3[%c1_9, %c0_10, %c0_11] : memref<2x2x32xf32, #tpu.memory_space<vmem>>, vector<1x2x32xf32>
    %11 = vector.shape_cast %10 : vector<1x2x32xf32> to vector<2x32xf32>
    %c0_12 = arith.constant 0 : index
    %c64 = arith.constant 64 : index
    %12 = vector.load %arg8[%c0_12, %c64] : memref<2x96xf32, #tpu.memory_space<vmem>>, vector<2x32xf32>
    tpu.vector_store %arg8[%c0_12, %c64], %11 {strides = array<i32>} : memref<2x96xf32, #tpu.memory_space<vmem>>, vector<2x32xf32>,
    %c0_13 = arith.constant 0 : index
    %c0_14 = arith.constant 0 : index
    %13 = vector.load %arg8[%c0_13, %c0_14] : memref<2x96xf32, #tpu.memory_space<vmem>>, vector<2x96xf32>
    %c16 = arith.constant 16 : index
    %c0_15 = arith.constant 0 : index
    %14 = vector.load %arg0[%c16, %c0_15] : memref<368x128xf32, #tpu.memory_space<vmem>>, vector<96x8xf32>
    %cst_16 = arith.constant dense<0.000000e+00> : vector<2x8xf32>
    %15 = tpu.matmul %13, %14, %cst_16 {dimension_numbers = #tpu.dot_dimension_numbers<[1], [0], [0], [1], [0, 0, 1, 1], [], []>} : vector<2x96xf32>, vector<96x8xf32>, vector<2x8xf32> -> vector<2x8xf32>
    %c112 = arith.constant 112 : index
    %c0_17 = arith.constant 0 : index
    %16 = vector.load %arg0[%c112, %c0_17] : memref<368x128xf32, #tpu.memory_space<vmem>>, vector<1x8xf32>
    %17 = vector.broadcast %16 : vector<1x8xf32> to vector<2x8xf32>
    %18 = arith.addf %15, %17 : vector<2x8xf32>
    %cst_18 = arith.constant dense<0xFF800000> : vector<2xf32>
    %19 = vector.multi_reduction <maximumf>, %18, %cst_18 [1] : vector<2x8xf32> to vector<2xf32>
    %20 = vector.shape_cast %19 : vector<2xf32> to vector<2x1xf32>
    %21 = vector.broadcast %20 : vector<2x1xf32> to vector<2x8xf32>
    %22 = arith.subf %18, %21 : vector<2x8xf32>
    %23 = math.exp %22 : vector<2x8xf32>
    %cst_19 = arith.constant dense<0.000000e+00> : vector<2xf32>
    %24 = vector.multi_reduction <add>, %23, %cst_19 [1] : vector<2x8xf32> to vector<2xf32>
    %25 = vector.shape_cast %24 : vector<2xf32> to vector<2x1xf32>
    %26 = tpu.reciprocal %25 {approx = true} : vector<2x1xf32> -> vector<2x1xf32>
    %27 = vector.broadcast %26 : vector<2x1xf32> to vector<2x8xf32>
    %28 = arith.mulf %23, %27 : vector<2x8xf32>
    %29 = vector.shape_cast %28 : vector<2x8xf32> to vector<2x1x8xf32>
    %c0_20 = arith.constant 0 : index
    %c0_21 = arith.constant 0 : index
    %c0_22 = arith.constant 0 : index
    %30 = vector.load %arg4[%c0_20, %c0_21, %c0_22] : memref<2x8x32xf32, #tpu.memory_space<vmem>>, vector<2x8x32xf32>
    %cst_23 = arith.constant dense<0.000000e+00> : vector<2x1x32xf32>
    %31 = tpu.matmul %29, %30, %cst_23 {dimension_numbers = #tpu.dot_dimension_numbers<[2], [1], [1], [2], [0, 0, 0, 1, 1, 2], [0], [0]>} : vector<2x1x8xf32>, vector<2x8x32xf32>, vector<2x1x32xf32> -> vector<2x1x32xf32>
    %32 = vector.shape_cast %31 : vector<2x1x32xf32> to vector<2x32xf32>
    %c0_24 = arith.constant 0 : index
    %c32_25 = arith.constant 32 : index
    %33 = vector.load %arg8[%c0_24, %c32_25] : memref<2x96xf32, #tpu.memory_space<vmem>>, vector<2x32xf32>
    tpu.vector_store %arg8[%c0_24, %c32_25], %32 {strides = array<i32>} : memref<2x96xf32, #tpu.memory_space<vmem>>, vector<2x32xf32>,
    %c0_26 = arith.constant 0 : index
    %c0_27 = arith.constant 0 : index
    %34 = vector.load %arg8[%c0_26, %c0_27] : memref<2x96xf32, #tpu.memory_space<vmem>>, vector<2x64xf32>
    %c120 = arith.constant 120 : index
    %c0_28 = arith.constant 0 : index
    %35 = vector.load %arg0[%c120, %c0_28] : memref<368x128xf32, #tpu.memory_space<vmem>>, vector<64x32xf32>
    %cst_29 = arith.constant dense<0.000000e+00> : vector<2x32xf32>
    %36 = tpu.matmul %34, %35, %cst_29 {dimension_numbers = #tpu.dot_dimension_numbers<[1], [0], [0], [1], [0, 0, 1, 1], [], []>} : vector<2x64xf32>, vector<64x32xf32>, vector<2x32xf32> -> vector<2x32xf32>
    %c184 = arith.constant 184 : index
    %c0_30 = arith.constant 0 : index
    %37 = vector.load %arg0[%c184, %c0_30] : memref<368x128xf32, #tpu.memory_space<vmem>>, vector<1x32xf32>
    %38 = vector.broadcast %37 : vector<1x32xf32> to vector<2x32xf32>
    %39 = arith.addf %36, %38 : vector<2x32xf32>
    %cst_31 = arith.constant 0.000000e+00 : f32
    %40 = vector.broadcast %cst_31 : f32 to vector<2x32xf32>
    %41 = arith.maximumf %39, %40 : vector<2x32xf32>
    %c0_32 = arith.constant 0 : index
    %c0_33 = arith.constant 0 : index
    %42 = vector.load %arg8[%c0_32, %c0_33] : memref<2x96xf32, #tpu.memory_space<vmem>>, vector<2x32xf32>
    tpu.vector_store %arg8[%c0_32, %c0_33], %41 {strides = array<i32>} : memref<2x96xf32, #tpu.memory_space<vmem>>, vector<2x32xf32>,
    %c0_34 = arith.constant 0 : index
    %c0_35 = arith.constant 0 : index
    %c0_36 = arith.constant 0 : index
    %43 = vector.load %arg2[%c0_34, %c0_35, %c0_36] : memref<2x2x32xf32, #tpu.memory_space<vmem>>, vector<1x2x32xf32>
    %44 = vector.shape_cast %43 : vector<1x2x32xf32> to vector<2x32xf32>
    %c0_37 = arith.constant 0 : index
    %c32_38 = arith.constant 32 : index
    %45 = vector.load %arg8[%c0_37, %c32_38] : memref<2x96xf32, #tpu.memory_space<vmem>>, vector<2x32xf32>
    tpu.vector_store %arg8[%c0_37, %c32_38], %44 {strides = array<i32>} : memref<2x96xf32, #tpu.memory_space<vmem>>, vector<2x32xf32>,
    %c192 = arith.constant 192 : index
    %c0_39 = arith.constant 0 : index
    %46 = vector.load %arg0[%c192, %c0_39] : memref<368x128xf32, #tpu.memory_space<vmem>>, vector<64x128xf32>
    %c320 = arith.constant 320 : index
    %c0_40 = arith.constant 0 : index
    %47 = vector.load %arg0[%c320, %c0_40] : memref<368x128xf32, #tpu.memory_space<vmem>>, vector<1x128xf32>
    %c0_41 = arith.constant 0 : index
    %c0_42 = arith.constant 0 : index
    %48 = vector.load %arg8[%c0_41, %c0_42] : memref<2x96xf32, #tpu.memory_space<vmem>>, vector<2x64xf32>
    %cst_43 = arith.constant dense<0.000000e+00> : vector<2x128xf32>
    %49 = tpu.matmul %48, %46, %cst_43 {dimension_numbers = #tpu.dot_dimension_numbers<[1], [0], [0], [1], [0, 0, 1, 1], [], []>} : vector<2x64xf32>, vector<64x128xf32>, vector<2x128xf32> -> vector<2x128xf32>
    %50 = vector.broadcast %47 : vector<1x128xf32> to vector<2x128xf32>
    %51 = arith.addf %49, %50 : vector<2x128xf32>
    %52 = arith.negf %51 : vector<2x128xf32>
    %53 = math.exp %52 : vector<2x128xf32>
    %cst_44 = arith.constant 1.000000e+00 : f32
    %54 = vector.broadcast %cst_44 : f32 to vector<2x128xf32>
    %55 = arith.addf %54, %53 : vector<2x128xf32>
    %56 = arith.divf %54, %55 : vector<2x128xf32>
    %57 = vector.extract_strided_slice %51 {offsets = [0, 64], sizes = [2, 32], strides = [1, 1]} : vector<2x128xf32> to vector<2x32xf32>
    %58 = math.tanh %57 : vector<2x32xf32>
    %59 = vector.extract_strided_slice %56 {offsets = [0, 32], sizes = [2, 32], strides = [1, 1]} : vector<2x128xf32> to vector<2x32xf32>
    %c0_45 = arith.constant 0 : index
    %c0_46 = arith.constant 0 : index
    %c0_47 = arith.constant 0 : index
    %60 = vector.load %arg3[%c0_45, %c0_46, %c0_47] : memref<2x2x32xf32, #tpu.memory_space<vmem>>, vector<1x2x32xf32>
    %61 = vector.shape_cast %60 : vector<1x2x32xf32> to vector<2x32xf32>
    %62 = arith.mulf %59, %61 : vector<2x32xf32>
    %63 = vector.extract_strided_slice %56 {offsets = [0, 0], sizes = [2, 32], strides = [1, 1]} : vector<2x128xf32> to vector<2x32xf32>
    %64 = arith.mulf %63, %58 : vector<2x32xf32>
    %65 = arith.addf %62, %64 : vector<2x32xf32>
    %66 = vector.extract_strided_slice %56 {offsets = [0, 96], sizes = [2, 32], strides = [1, 1]} : vector<2x128xf32> to vector<2x32xf32>
    %67 = math.tanh %65 : vector<2x32xf32>
    %68 = arith.mulf %66, %67 : vector<2x32xf32>
    %c0_48 = arith.constant 0 : index
    %c0_49 = arith.constant 0 : index
    %c0_50 = arith.constant 0 : index
    %69 = vector.load %arg6[%c0_48, %c0_49, %c0_50] : memref<2x2x32xf32, #tpu.memory_space<vmem>>, vector<1x2x32xf32>
    %70 = vector.shape_cast %69 : vector<1x2x32xf32> to vector<2x32xf32>
    %71 = vector.shape_cast %68 : vector<2x32xf32> to vector<1x2x32xf32>
    tpu.vector_store %arg6[%c0_48, %c0_49, %c0_50], %71 {strides = array<i32>} : memref<2x2x32xf32, #tpu.memory_space<vmem>>, vector<1x2x32xf32>,
    %c0_51 = arith.constant 0 : index
    %c0_52 = arith.constant 0 : index
    %c0_53 = arith.constant 0 : index
    %72 = vector.load %arg7[%c0_51, %c0_52, %c0_53] : memref<2x2x32xf32, #tpu.memory_space<vmem>>, vector<1x2x32xf32>
    %73 = vector.shape_cast %72 : vector<1x2x32xf32> to vector<2x32xf32>
    %74 = vector.shape_cast %65 : vector<2x32xf32> to vector<1x2x32xf32>
    tpu.vector_store %arg7[%c0_51, %c0_52, %c0_53], %74 {strides = array<i32>} : memref<2x2x32xf32, #tpu.memory_space<vmem>>, vector<1x2x32xf32>,
    %c0_54 = arith.constant 0 : index
    %c0_55 = arith.constant 0 : index
    %75 = vector.load %arg8[%c0_54, %c0_55] : memref<2x96xf32, #tpu.memory_space<vmem>>, vector<2x32xf32>
    tpu.vector_store %arg8[%c0_54, %c0_55], %68 {strides = array<i32>} : memref<2x96xf32, #tpu.memory_space<vmem>>, vector<2x32xf32>,
    %c1_56 = arith.constant 1 : index
    %c0_57 = arith.constant 0 : index
    %c0_58 = arith.constant 0 : index
    %76 = vector.load %arg2[%c1_56, %c0_57, %c0_58] : memref<2x2x32xf32, #tpu.memory_space<vmem>>, vector<1x2x32xf32>
    %77 = vector.shape_cast %76 : vector<1x2x32xf32> to vector<2x32xf32>
    %c0_59 = arith.constant 0 : index
    %c32_60 = arith.constant 32 : index
    %78 = vector.load %arg8[%c0_59, %c32_60] : memref<2x96xf32, #tpu.memory_space<vmem>>, vector<2x32xf32>
    tpu.vector_store %arg8[%c0_59, %c32_60], %77 {strides = array<i32>} : memref<2x96xf32, #tpu.memory_space<vmem>>, vector<2x32xf32>,
    %c256 = arith.constant 256 : index
    %c0_61 = arith.constant 0 : index
    %79 = vector.load %arg0[%c256, %c0_61] : memref<368x128xf32, #tpu.memory_space<vmem>>, vector<64x128xf32>
    %c321 = arith.constant 321 : index
    %c0_62 = arith.constant 0 : index
    %80 = vector.load %arg0[%c321, %c0_62] : memref<368x128xf32, #tpu.memory_space<vmem>>, vector<1x128xf32>
    %c0_63 = arith.constant 0 : index
    %c0_64 = arith.constant 0 : index
    %81 = vector.load %arg8[%c0_63, %c0_64] : memref<2x96xf32, #tpu.memory_space<vmem>>, vector<2x64xf32>
    %cst_65 = arith.constant dense<0.000000e+00> : vector<2x128xf32>
    %82 = tpu.matmul %81, %79, %cst_65 {dimension_numbers = #tpu.dot_dimension_numbers<[1], [0], [0], [1], [0, 0, 1, 1], [], []>} : vector<2x64xf32>, vector<64x128xf32>, vector<2x128xf32> -> vector<2x128xf32>
    %83 = vector.broadcast %80 : vector<1x128xf32> to vector<2x128xf32>
    %84 = arith.addf %82, %83 : vector<2x128xf32>
    %85 = arith.negf %84 : vector<2x128xf32>
    %86 = math.exp %85 : vector<2x128xf32>
    %cst_66 = arith.constant 1.000000e+00 : f32
    %87 = vector.broadcast %cst_66 : f32 to vector<2x128xf32>
    %88 = arith.addf %87, %86 : vector<2x128xf32>
    %89 = arith.divf %87, %88 : vector<2x128xf32>
    %90 = vector.extract_strided_slice %84 {offsets = [0, 64], sizes = [2, 32], strides = [1, 1]} : vector<2x128xf32> to vector<2x32xf32>
    %91 = math.tanh %90 : vector<2x32xf32>
    %92 = vector.extract_strided_slice %89 {offsets = [0, 32], sizes = [2, 32], strides = [1, 1]} : vector<2x128xf32> to vector<2x32xf32>
    %c1_67 = arith.constant 1 : index
    %c0_68 = arith.constant 0 : index
    %c0_69 = arith.constant 0 : index
    %93 = vector.load %arg3[%c1_67, %c0_68, %c0_69] : memref<2x2x32xf32, #tpu.memory_space<vmem>>, vector<1x2x32xf32>
    %94 = vector.shape_cast %93 : vector<1x2x32xf32> to vector<2x32xf32>
    %95 = arith.mulf %92, %94 : vector<2x32xf32>
    %96 = vector.extract_strided_slice %89 {offsets = [0, 0], sizes = [2, 32], strides = [1, 1]} : vector<2x128xf32> to vector<2x32xf32>
    %97 = arith.mulf %96, %91 : vector<2x32xf32>
    %98 = arith.addf %95, %97 : vector<2x32xf32>
    %99 = vector.extract_strided_slice %89 {offsets = [0, 96], sizes = [2, 32], strides = [1, 1]} : vector<2x128xf32> to vector<2x32xf32>
    %100 = math.tanh %98 : vector<2x32xf32>
    %101 = arith.mulf %99, %100 : vector<2x32xf32>
    %c1_70 = arith.constant 1 : index
    %c0_71 = arith.constant 0 : index
    %c0_72 = arith.constant 0 : index
    %102 = vector.load %arg6[%c1_70, %c0_71, %c0_72] : memref<2x2x32xf32, #tpu.memory_space<vmem>>, vector<1x2x32xf32>
    %103 = vector.shape_cast %102 : vector<1x2x32xf32> to vector<2x32xf32>
    %104 = vector.shape_cast %101 : vector<2x32xf32> to vector<1x2x32xf32>
    tpu.vector_store %arg6[%c1_70, %c0_71, %c0_72], %104 {strides = array<i32>} : memref<2x2x32xf32, #tpu.memory_space<vmem>>, vector<1x2x32xf32>,
    %c1_73 = arith.constant 1 : index
    %c0_74 = arith.constant 0 : index
    %c0_75 = arith.constant 0 : index
    %105 = vector.load %arg7[%c1_73, %c0_74, %c0_75] : memref<2x2x32xf32, #tpu.memory_space<vmem>>, vector<1x2x32xf32>
    %106 = vector.shape_cast %105 : vector<1x2x32xf32> to vector<2x32xf32>
    %107 = vector.shape_cast %98 : vector<2x32xf32> to vector<1x2x32xf32>
    tpu.vector_store %arg7[%c1_73, %c0_74, %c0_75], %107 {strides = array<i32>} : memref<2x2x32xf32, #tpu.memory_space<vmem>>, vector<1x2x32xf32>,
    %c328 = arith.constant 328 : index
    %c0_76 = arith.constant 0 : index
    %108 = vector.load %arg0[%c328, %c0_76] : memref<368x128xf32, #tpu.memory_space<vmem>>, vector<32x128xf32>
    %cst_77 = arith.constant dense<0.000000e+00> : vector<2x128xf32>
    %109 = tpu.matmul %101, %108, %cst_77 {dimension_numbers = #tpu.dot_dimension_numbers<[1], [0], [0], [1], [0, 0, 1, 1], [], []>} : vector<2x32xf32>, vector<32x128xf32>, vector<2x128xf32> -> vector<2x128xf32>
    %c360 = arith.constant 360 : index
    %c0_78 = arith.constant 0 : index
    %110 = vector.load %arg0[%c360, %c0_78] : memref<368x128xf32, #tpu.memory_space<vmem>>, vector<1x128xf32>
    %111 = vector.broadcast %110 : vector<1x128xf32> to vector<2x128xf32>
    %112 = arith.addf %109, %111 : vector<2x128xf32>
    %c0_79 = arith.constant 0 : index
    %c0_80 = arith.constant 0 : index
    %113 = vector.load %arg5[%c0_79, %c0_80] : memref<2x128xf32, #tpu.memory_space<vmem>>, vector<2x128xf32>
    tpu.vector_store %arg5[%c0_79, %c0_80], %112 {strides = array<i32>} : memref<2x128xf32, #tpu.memory_space<vmem>>, vector<2x128xf32>,
    return
  }
}

</mosaic_0001>

<llo_original>
// kernel: decoder_attention_lstm_step.1
$region0: #{decoder_attention_lstm_step.1}
  #allocation0 [shape = 'u32[]', space=smem, size = 0x4, offset = 0x4, fixed_abs, tag = 'smem constant byte address 0x4 - core index']
  #allocation1 [shape = 'u32[144,128]{1,0:T(1,128)}', space=vmem, size = 0x12000, scoped, tag = 'internal scratch']
  #allocation2 [shape = 'f32[2,96]{1,0:T(2,128)}', space=vmem, size = 0x400, scoped, tag = 'scratch operand']
  %s0 = inlined_call_operand.hbm [shape: f32[368,128], index: 0, kind: input, shape index: {}]
  %s1 = inlined_call_operand.vmem [shape: f32[2,4], index: 1, kind: input, shape index: {}]
  %s2 = inlined_call_operand.vmem [shape: f32[2,2,32], index: 2, kind: input, shape index: {}, may-alias: {2,6}]
  %s3 = inlined_call_operand.vmem [shape: f32[2,2,32], index: 3, kind: input, shape index: {}, may-alias: {3,7}]
  %s4 = inlined_call_operand.hbm [shape: f32[2,8,32], index: 4, kind: input, shape index: {}]
  %s5 = inlined_call_operand.hbm [shape: f32[2,128], index: 5, kind: output, shape index: {0}]
  %s6 = inlined_call_operand.vmem [shape: f32[2,2,32], index: 6, kind: output, shape index: {1}, may-alias: {2,6}]
  %s7 = inlined_call_operand.vmem [shape: f32[2,2,32], index: 7, kind: output, shape index: {2}, may-alias: {3,7}]
  %8 = xla_tuple %s5, %s6, %s7
  %s9 = sld [smem:[#allocation0]]
  $region54: #{decoder_attention_lstm_step.1} parent=0
    _
  %s11 = ssub.s32 1, %s9
  %s12 = scalar_select 0, %s11, %s9
  $region1: #{decoder_attention_lstm_step.1} parent=0
    #allocation3 [shape = 'u8[188416]{0}', space=vmem, size = 0x2e000, scoped, tag = 'input window, operand 0, single buffered']
    #allocation4 [shape = 's32[1]{0}', space=sflag, size = 0x4, scoped, tag = 'scoped memory for decoder_attention_lstm_step.1']
    #allocation5 [shape = 's32[1]{0}', space=sflag, size = 0x4, scoped, tag = 'scoped memory for decoder_attention_lstm_step.1']
    #allocation6 [shape = 'u8[8192]{0}', space=vmem, size = 0x2000, scoped, tag = 'input window, operand 4, single buffered']
    #allocation7 [shape = 's32[1]{0}', space=sflag, size = 0x4, scoped, tag = 'scoped memory for decoder_attention_lstm_step.1']
    #allocation8 [shape = 'u8[1024]{0}', space=vmem, size = 0x400, scoped, tag = 'output window, operand 0, single buffered']
    %13 = vsyncpa [#allocation4], 0
    %14 = vsyncpa [#allocation7], 0
    %15 = vsyncpa [#allocation5], 0
    // Predicated region
    $region2: #{decoder_attention_lstm_step.1} parent=1 // pred_check
      _
    $region3: #{decoder_attention_lstm_step.1} parent=1 // pred_check_branch
      %17 = sbr.rel (0) target = $region5
    $region4: #{decoder_attention_lstm_step.1} parent=1 // pred_region
      %s19 = ssub.s32 5888, 5888
      %20 = vsyncadd [#allocation4], %s19
      %s21 = sshll.u32 [#allocation3], 4
      %s22 = int_to_ptr.vmem [resolvable:$true] %s21
      %27 = dma.hbm_to_vmem [thread:$0]  %s0, 5888, %s22, [#allocation4], 128, 128, 8
    $region5: #{decoder_attention_lstm_step.1} parent=1 // pred_fallthru
      _
    // Predicated region
    $region6: #{decoder_attention_lstm_step.1} parent=1 // pred_check
      _
    $region7: #{decoder_attention_lstm_step.1} parent=1 // pred_check_branch
      %29 = sbr.rel (0) target = $region9
    $region8: #{decoder_attention_lstm_step.1} parent=1 // pred_region
      _
    $region9: #{decoder_attention_lstm_step.1} parent=1 // pred_fallthru
      _
    // Predicated region
    $region10: #{decoder_attention_lstm_step.1} parent=1 // pred_check
      _
    $region11: #{decoder_attention_lstm_step.1} parent=1 // pred_check_branch
      %31 = sbr.rel (0) target = $region13
    $region12: #{decoder_attention_lstm_step.1} parent=1 // pred_region
      _
    $region13: #{decoder_attention_lstm_step.1} parent=1 // pred_fallthru
      _
    // Predicated region
    $region14: #{decoder_attention_lstm_step.1} parent=1 // pred_check
      _
    $region15: #{decoder_attention_lstm_step.1} parent=1 // pred_check_branch
      %33 = sbr.rel (0) target = $region17
    $region16: #{decoder_attention_lstm_step.1} parent=1 // pred_region
      _
    $region17: #{decoder_attention_lstm_step.1} parent=1 // pred_fallthru
      _
    // Predicated region
    $region18: #{decoder_attention_lstm_step.1} parent=1 // pred_check
      _
    $region19: #{decoder_attention_lstm_step.1} parent=1 // pred_check_branch
      %35 = sbr.rel (0) target = $region21
    $region20: #{decoder_attention_lstm_step.1} parent=1 // pred_region
      %s37 = ssub.s32 256, 256
      %38 = vsyncadd [#allocation7], %s37
      %s39 = sshll.u32 [#allocation6], 4
      %s40 = int_to_ptr.vmem [resolvable:$true] %s39
      %45 = dma.hbm_to_vmem [thread:$0]  %s4, 256, %s40, [#allocation7], 128, 128, 8
    $region21: #{decoder_attention_lstm_step.1} parent=1 // pred_fallthru
      _
    // Predicated region
    $region22: #{decoder_attention_lstm_step.1} parent=1 // pred_check
      _
    $region23: #{decoder_attention_lstm_step.1} parent=1 // pred_check_branch
      %47 = sbr.rel (0) target = $region25
    $region24: #{decoder_attention_lstm_step.1} parent=1 // pred_region
      %48 = dma.done [#allocation4], 5888
    $region25: #{decoder_attention_lstm_step.1} parent=1 // pred_fallthru
      _
    // Predicated region
    $region26: #{decoder_attention_lstm_step.1} parent=1 // pred_check
      _
    $region27: #{decoder_attention_lstm_step.1} parent=1 // pred_check_branch
      %50 = sbr.rel (0) target = $region29
    $region28: #{decoder_attention_lstm_step.1} parent=1 // pred_region
      %51 = dma.done [#allocation7], 256
    $region29: #{decoder_attention_lstm_step.1} parent=1 // pred_fallthru
      _
    %v52 = vld [vmem:[%s1] sm:$0x3]
    %v53 = vld [vmem:[#allocation3] sm:$0xf]
    %v54 = vld [vmem:[#allocation3 + $0x8] sm:$0x1]
    %v55 = vlaneseq
    %v56 = vshrl.u32 %v55, 7
    %v57 = vsub.s32 0, %v56
    %v58 = vrot.slane %v54, %v57
    %vm59 = vcmask 31744
    %v61 = vsel %vm59, %v52, 0
    %vm63 = vcmask 1043456
    %v65 = vsel %vm63, %v53, 0
    %67 = vmatprep.subr.mxu0 0.0
    %68 = vmatpush1.msra.mxu0 0.0
    %69 = vmatprep.subr.mxu0 0.0
    %70 = vmatpush1.msra.mxu0 0.0
    %71 = vmatprep.subr.mxu0 0.0
    %72 = vmatpush1.msra.mxu0 0.0
    %73 = vmatprep.subr.mxu0 0.0
    %74 = vmatpush1.msra.mxu0 0.0
    %75 = vmatprep.subr.mxu0 0.0
    %76 = vmatpush1.msra.mxu0 0.0
    %77 = vmatprep.subr.mxu0 0.0
    %78 = vmatpush1.msra.mxu0 0.0
    %79 = vmatprep.subr.mxu0 0.0
    %80 = vmatpush1.msra.mxu0 0.0
    %81 = vmatprep.subr.mxu0 0.0
    %82 = vmatpush1.msra.mxu0 0.0
    %83 = vmatprep.subr.mxu0 0.0
    %84 = vmatpush1.msra.mxu0 0.0
    %85 = vmatprep.subr.mxu0 0.0
    %86 = vmatpush1.msra.mxu0 0.0
    %87 = vmatprep.subr.mxu0 0.0
    %88 = vmatpush1.msra.mxu0 0.0
    %89 = vmatprep.subr.mxu0 0.0
    %90 = vmatpush1.msra.mxu0 0.0
    %91 = vmatprep.subr.mxu0 0.0
    %92 = vmatpush1.msra.mxu0 0.0
    %93 = vmatprep.subr.mxu0 0.0
    %94 = vmatpush1.msra.mxu0 0.0
    %95 = vmatprep.subr.mxu0 0.0
    %96 = vmatpush1.msra.mxu0 0.0
    %97 = vmatprep.subr.mxu0 0.0
    %98 = vmatpush1.msra.mxu0 %v65
    %99 = vmatprep.subr.mxu0 0.0
    %100 = vmatpush2.msra.mxu0 0.0
    %101 = vmatprep.subr.mxu0 0.0
    %102 = vmatpush2.msra.mxu0 0.0
    %103 = vmatprep.subr.mxu0 0.0
    %104 = vmatpush2.msra.mxu0 0.0
    %105 = vmatprep.subr.mxu0 0.0
    %106 = vmatpush2.msra.mxu0 0.0
    %107 = vmatprep.subr.mxu0 0.0
    %108 = vmatpush2.msra.mxu0 0.0
    %109 = vmatprep.subr.mxu0 0.0
    %110 = vmatpush2.msra.mxu0 0.0
    %111 = vmatprep.subr.mxu0 0.0
    %112 = vmatpush2.msra.mxu0 0.0
    %113 = vmatprep.subr.mxu0 0.0
    %114 = vmatpush2.msra.mxu0 0.0
    %115 = vmatprep.subr.mxu0 0.0
    %116 = vmatpush2.msra.mxu0 0.0
    %117 = vmatprep.subr.mxu0 0.0
    %118 = vmatpush2.msra.mxu0 0.0
    %119 = vmatprep.subr.mxu0 0.0
    %120 = vmatpush2.msra.mxu0 0.0
    %121 = vmatprep.subr.mxu0 0.0
    %122 = vmatpush2.msra.mxu0 0.0
    %123 = vmatprep.subr.mxu0 0.0
    %124 = vmatpush2.msra.mxu0 0.0
    %125 = vmatprep.subr.mxu0 0.0
    %126 = vmatpush2.msra.mxu0 0.0
    %127 = vmatprep.subr.mxu0 0.0
    %128 = vmatpush2.msra.mxu0 0.0
    %129 = vmatprep.subr.mxu0 0.0
    %130 = vmatpush2.msra.mxu0 0.0
    %131 = vmatprep.mubr.f32.mxu0 0.0
    %132 = vmatmul.mubr.f32.gmra.mxu0 %v61
    %v133 = vpop.f32.mrf.mxu0
    %v134 = vadd.f32 %v58, %v133
    %v135 = vpop.f32.mrf.mxu0
    %136 = vdwg.mxu0
    %vm137 = vcmask 254976
    %138 = vst.msk [vmem:[#allocation2] sm:$0x3] %vm137, %v134
    %s139 = scalar_lea.vmem %s2, 2
    %v140 = vld [vmem:[%s139] sm:$0x3]
    %142 = vrot.lane.b32.xlu0 %v140, 32
    %v143 = vpop.permute.xlu0 %142
    %vm145 = vcmask 517376
    %146 = vst.msk [vmem:[#allocation2] sm:$0x3] %vm145, %v143
    %s147 = scalar_lea.vmem %s3, 2
    %v148 = vld [vmem:[%s147] sm:$0x3]
    %150 = vrot.lane.b32.xlu0 %v148, 64
    %v151 = vpop.permute.xlu0 %150
    %vm153 = vcmask 779776
    %154 = vst.msk [vmem:[#allocation2] sm:$0x3] %vm153, %v151
    %v155 = vld [vmem:[#allocation2] sm:$0x3]
    %v156 = vld [vmem:[#allocation3 + $0x10] sm:$0xff]
    %v157 = vld [vmem:[#allocation3 + $0x18] sm:$0xff]
    %v158 = vld [vmem:[#allocation3 + $0x20] sm:$0xff]
    %v159 = vld [vmem:[#allocation3 + $0x28] sm:$0xff]
    %v160 = vld [vmem:[#allocation3 + $0x30] sm:$0xff]
    %v161 = vld [vmem:[#allocation3 + $0x38] sm:$0xff]
    %v162 = vld [vmem:[#allocation3 + $0x40] sm:$0xff]
    %v163 = vld [vmem:[#allocation3 + $0x48] sm:$0xff]
    %v164 = vld [vmem:[#allocation3 + $0x50] sm:$0xff]
    %v165 = vld [vmem:[#allocation3 + $0x58] sm:$0xff]
    %v166 = vld [vmem:[#allocation3 + $0x60] sm:$0xff]
    %v167 = vld [vmem:[#allocation3 + $0x68] sm:$0xff]
    %v168 = vld [vmem:[#allocation3 + $0x70] sm:$0x1]
    %v169 = vlaneseq
    %v170 = vshrl.u32 %v169, 7
    %v171 = vsub.s32 0, %v170
    %v172 = vrot.slane %v168, %v171
    %vm173 = vcmask 785408
    %v175 = vsel %vm173, %v155, 0
    %177 = vmatprep.subr.mxu0 0.0
    %178 = vmatpush1.msra.mxu0 0.0
    %179 = vmatprep.subr.mxu0 0.0
    %180 = vmatpush1.msra.mxu0 0.0
    %181 = vmatprep.subr.mxu0 0.0
    %182 = vmatpush1.msra.mxu0 0.0
    %183 = vmatprep.subr.mxu0 0.0
    %184 = vmatpush1.msra.mxu0 0.0
    %185 = vmatprep.subr.mxu0 0.0
    %186 = vmatpush1.msra.mxu0 %v167
    %187 = vmatprep.subr.mxu0 0.0
    %188 = vmatpush1.msra.mxu0 %v166
    %189 = vmatprep.subr.mxu0 0.0
    %190 = vmatpush1.msra.mxu0 %v165
    %191 = vmatprep.subr.mxu0 0.0
    %192 = vmatpush1.msra.mxu0 %v164
    %193 = vmatprep.subr.mxu0 0.0
    %194 = vmatpush1.msra.mxu0 %v163
    %195 = vmatprep.subr.mxu0 0.0
    %196 = vmatpush1.msra.mxu0 %v162
    %197 = vmatprep.subr.mxu0 0.0
    %198 = vmatpush1.msra.mxu0 %v161
    %199 = vmatprep.subr.mxu0 0.0
    %200 = vmatpush1.msra.mxu0 %v160
    %201 = vmatprep.subr.mxu0 0.0
    %202 = vmatpush1.msra.mxu0 %v159
    %203 = vmatprep.subr.mxu0 0.0
    %204 = vmatpush1.msra.mxu0 %v158
    %205 = vmatprep.subr.mxu0 0.0
    %206 = vmatpush1.msra.mxu0 %v157
    %207 = vmatprep.subr.mxu0 0.0
    %208 = vmatpush1.msra.mxu0 %v156
    %209 = vmatprep.subr.mxu0 0.0
    %210 = vmatpush2.msra.mxu0 0.0
    %211 = vmatprep.subr.mxu0 0.0
    %212 = vmatpush2.msra.mxu0 0.0
    %213 = vmatprep.subr.mxu0 0.0
    %214 = vmatpush2.msra.mxu0 0.0
    %215 = vmatprep.subr.mxu0 0.0
    %216 = vmatpush2.msra.mxu0 0.0
    %217 = vmatprep.subr.mxu0 0.0
    %218 = vmatpush2.msra.mxu0 0.0
    %219 = vmatprep.subr.mxu0 0.0
    %220 = vmatpush2.msra.mxu0 0.0
    %221 = vmatprep.subr.mxu0 0.0
    %222 = vmatpush2.msra.mxu0 0.0
    %223 = vmatprep.subr.mxu0 0.0
    %224 = vmatpush2.msra.mxu0 0.0
    %225 = vmatprep.subr.mxu0 0.0
    %226 = vmatpush2.msra.mxu0 0.0
    %227 = vmatprep.subr.mxu0 0.0
    %228 = vmatpush2.msra.mxu0 0.0
    %229 = vmatprep.subr.mxu0 0.0
    %230 = vmatpush2.msra.mxu0 0.0
    %231 = vmatprep.subr.mxu0 0.0
    %232 = vmatpush2.msra.mxu0 0.0
    %233 = vmatprep.subr.mxu0 0.0
    %234 = vmatpush2.msra.mxu0 0.0
    %235 = vmatprep.subr.mxu0 0.0
    %236 = vmatpush2.msra.mxu0 0.0
    %237 = vmatprep.subr.mxu0 0.0
    %238 = vmatpush2.msra.mxu0 0.0
    %239 = vmatprep.subr.mxu0 0.0
    %240 = vmatpush2.msra.mxu0 0.0
    %241 = vmatprep.mubr.f32.mxu0 0.0
    %242 = vmatmul.mubr.f32.gmra.mxu0 %v175
    %v243 = vpop.f32.mrf.mxu0
    %v244 = vadd.f32 %v172, %v243
    %v245 = vpop.f32.mrf.mxu0
    %246 = vdwg.mxu0
    %vm247 = vcmask 58368
    %v248 = vsel %vm247, %v244, -inf
    %249 = vmax.xlane.f32.xlu0 %v248
    %v250 = vpop.xlane.xlu0 %249
    %v251 = vsub.f32 %v244, %v250
    %v252 = vmul.f32 %v251, 1.442695
    %v253 = vpow.pop %v252
    %v254 = vsel %vm247, %v253, 0.0
    %255 = vadd.xlane.f32.xlu0 %v254
    %v256 = vpop.xlane.xlu0 %255
    %v257 = vrcp.pop %v256
    %v258 = vmul.f32 %v253, %v257
    %v261 = vunpack.c.l.s4 1966171168
    %v262 = vunpack.c.0.s8 %v261
    %v263 = vlaneseq
    %v264 = vshrl.u32 %v263, 7
    %v265 = vsub.s32 %v262, %v264
    %v266 = vrot.slane %v258, %v265
    %v267 = vcombine.high %v266, %v266
    %v269 = vunpack.c.l.s4 1966171168
    %v270 = vunpack.c.0.s8 %v269
    %v271 = vlaneseq
    %v272 = vshrl.u32 %v271, 7
    %v273 = vsub.s32 %v270, %v272
    %v274 = vrot.slane %v266, %v273
    %v276 = vunpack.c.l.s4 1966171168
    %v277 = vunpack.c.0.s8 %v276
    %v278 = vlaneseq
    %v279 = vshrl.u32 %v278, 7
    %v280 = vsub.s32 %v277, %v279
    %v281 = vrot.slane %v267, %v280
    %v282 = vld [vmem:[#allocation6] sm:$0xff]
    %v283 = vld [vmem:[#allocation6 + $0x8] sm:$0xff]
    %vm284 = vcmask 64512
    %v285 = vsel %vm284, %v274, 0
    %287 = vmatprep.subr.mxu0 0.0
    %288 = vmatpush1.msra.mxu0 0.0
    %289 = vmatprep.subr.mxu0 0.0
    %290 = vmatpush1.msra.mxu0 0.0
    %291 = vmatprep.subr.mxu0 0.0
    %292 = vmatpush1.msra.mxu0 0.0
    %293 = vmatprep.subr.mxu0 0.0
    %294 = vmatpush1.msra.mxu0 0.0
    %295 = vmatprep.subr.mxu0 0.0
    %296 = vmatpush1.msra.mxu0 0.0
    %297 = vmatprep.subr.mxu0 0.0
    %298 = vmatpush1.msra.mxu0 0.0
    %299 = vmatprep.subr.mxu0 0.0
    %300 = vmatpush1.msra.mxu0 0.0
    %301 = vmatprep.subr.mxu0 0.0
    %302 = vmatpush1.msra.mxu0 0.0
    %303 = vmatprep.subr.mxu0 0.0
    %304 = vmatpush1.msra.mxu0 0.0
    %305 = vmatprep.subr.mxu0 0.0
    %306 = vmatpush1.msra.mxu0 0.0
    %307 = vmatprep.subr.mxu0 0.0
    %308 = vmatpush1.msra.mxu0 0.0
    %309 = vmatprep.subr.mxu0 0.0
    %310 = vmatpush1.msra.mxu0 0.0
    %311 = vmatprep.subr.mxu0 0.0
    %312 = vmatpush1.msra.mxu0 0.0
    %313 = vmatprep.subr.mxu0 0.0
    %314 = vmatpush1.msra.mxu0 0.0
    %315 = vmatprep.subr.mxu0 0.0
    %316 = vmatpush1.msra.mxu0 0.0
    %317 = vmatprep.subr.mxu0 0.0
    %318 = vmatpush1.msra.mxu0 %v282
    %319 = vmatprep.subr.mxu0 0.0
    %320 = vmatpush2.msra.mxu0 0.0
    %321 = vmatprep.subr.mxu0 0.0
    %322 = vmatpush2.msra.mxu0 0.0
    %323 = vmatprep.subr.mxu0 0.0
    %324 = vmatpush2.msra.mxu0 0.0
    %325 = vmatprep.subr.mxu0 0.0
    %326 = vmatpush2.msra.mxu0 0.0
    %327 = vmatprep.subr.mxu0 0.0
    %328 = vmatpush2.msra.mxu0 0.0
    %329 = vmatprep.subr.mxu0 0.0
    %330 = vmatpush2.msra.mxu0 0.0
    %331 = vmatprep.subr.mxu0 0.0
    %332 = vmatpush2.msra.mxu0 0.0
    %333 = vmatprep.subr.mxu0 0.0
    %334 = vmatpush2.msra.mxu0 0.0
    %335 = vmatprep.subr.mxu0 0.0
    %336 = vmatpush2.msra.mxu0 0.0
    %337 = vmatprep.subr.mxu0 0.0
    %338 = vmatpush2.msra.mxu0 0.0
    %339 = vmatprep.subr.mxu0 0.0
    %340 = vmatpush2.msra.mxu0 0.0
    %341 = vmatprep.subr.mxu0 0.0
    %342 = vmatpush2.msra.mxu0 0.0
    %343 = vmatprep.subr.mxu0 0.0
    %344 = vmatpush2.msra.mxu0 0.0
    %345 = vmatprep.subr.mxu0 0.0
    %346 = vmatpush2.msra.mxu0 0.0
    %347 = vmatprep.subr.mxu0 0.0
    %348 = vmatpush2.msra.mxu0 0.0
    %349 = vmatprep.subr.mxu0 0.0
    %350 = vmatpush2.msra.mxu0 0.0
    %351 = vmatprep.mubr.f32.mxu0 0.0
    %352 = vmatmul.mubr.f32.gmra.mxu0 %v285
    %v353 = vpop.f32.mrf.mxu0
    %v354 = vadd.f32 0.0, %v353
    %v355 = vpop.f32.mrf.mxu0
    %356 = vdwg.mxu0
    %v357 = vsel %vm284, %v281, 0
    %359 = vmatprep.subr.mxu0 0.0
    %360 = vmatpush1.msra.mxu0 0.0
    %361 = vmatprep.subr.mxu0 0.0
    %362 = vmatpush1.msra.mxu0 0.0
    %363 = vmatprep.subr.mxu0 0.0
    %364 = vmatpush1.msra.mxu0 0.0
    %365 = vmatprep.subr.mxu0 0.0
    %366 = vmatpush1.msra.mxu0 0.0
    %367 = vmatprep.subr.mxu0 0.0
    %368 = vmatpush1.msra.mxu0 0.0
    %369 = vmatprep.subr.mxu0 0.0
    %370 = vmatpush1.msra.mxu0 0.0
    %371 = vmatprep.subr.mxu0 0.0
    %372 = vmatpush1.msra.mxu0 0.0
    %373 = vmatprep.subr.mxu0 0.0
    %374 = vmatpush1.msra.mxu0 0.0
    %375 = vmatprep.subr.mxu0 0.0
    %376 = vmatpush1.msra.mxu0 0.0
    %377 = vmatprep.subr.mxu0 0.0
    %378 = vmatpush1.msra.mxu0 0.0
    %379 = vmatprep.subr.mxu0 0.0
    %380 = vmatpush1.msra.mxu0 0.0
    %381 = vmatprep.subr.mxu0 0.0
    %382 = vmatpush1.msra.mxu0 0.0
    %383 = vmatprep.subr.mxu0 0.0
    %384 = vmatpush1.msra.mxu0 0.0
    %385 = vmatprep.subr.mxu0 0.0
    %386 = vmatpush1.msra.mxu0 0.0
    %387 = vmatprep.subr.mxu0 0.0
    %388 = vmatpush1.msra.mxu0 0.0
    %389 = vmatprep.subr.mxu0 0.0
    %390 = vmatpush1.msra.mxu0 %v283
    %391 = vmatprep.subr.mxu0 0.0
    %392 = vmatpush2.msra.mxu0 0.0
    %393 = vmatprep.subr.mxu0 0.0
    %394 = vmatpush2.msra.mxu0 0.0
    %395 = vmatprep.subr.mxu0 0.0
    %396 = vmatpush2.msra.mxu0 0.0
    %397 = vmatprep.subr.mxu0 0.0
    %398 = vmatpush2.msra.mxu0 0.0
    %399 = vmatprep.subr.mxu0 0.0
    %400 = vmatpush2.msra.mxu0 0.0
    %401 = vmatprep.subr.mxu0 0.0
    %402 = vmatpush2.msra.mxu0 0.0
    %403 = vmatprep.subr.mxu0 0.0
    %404 = vmatpush2.msra.mxu0 0.0
    %405 = vmatprep.subr.mxu0 0.0
    %406 = vmatpush2.msra.mxu0 0.0
    %407 = vmatprep.subr.mxu0 0.0
    %408 = vmatpush2.msra.mxu0 0.0
    %409 = vmatprep.subr.mxu0 0.0
    %410 = vmatpush2.msra.mxu0 0.0
    %411 = vmatprep.subr.mxu0 0.0
    %412 = vmatpush2.msra.mxu0 0.0
    %413 = vmatprep.subr.mxu0 0.0
    %414 = vmatpush2.msra.mxu0 0.0
    %415 = vmatprep.subr.mxu0 0.0
    %416 = vmatpush2.msra.mxu0 0.0
    %417 = vmatprep.subr.mxu0 0.0
    %418 = vmatpush2.msra.mxu0 0.0
    %419 = vmatprep.subr.mxu0 0.0
    %420 = vmatpush2.msra.mxu0 0.0
    %421 = vmatprep.subr.mxu0 0.0
    %422 = vmatpush2.msra.mxu0 0.0
    %423 = vmatprep.mubr.f32.mxu0 0.0
    %424 = vmatmul.mubr.f32.gmra.mxu0 %v357
    %v425 = vpop.f32.mrf.mxu0
    %v426 = vadd.f32 0.0, %v425
    %v427 = vpop.f32.mrf.mxu0
    %428 = vdwg.mxu0
    %v431 = vrot.slane %v426, 7
    %vm432 = vcmask 1041409
    %v433 = vsel %vm432, %v431, %v354
    %434 = vrot.lane.b32.xlu0 %v433, 32
    %v435 = vpop.permute.xlu0 %434
    %437 = vst.msk [vmem:[#allocation2] sm:$0x3] %vm145, %v435
    %v438 = vld [vmem:[#allocation2] sm:$0x3]
    %v439 = vld [vmem:[#allocation3 + $0x78] sm:$0xff]
    %v440 = vld [vmem:[#allocation3 + $0x80] sm:$0xff]
    %v441 = vld [vmem:[#allocation3 + $0x88] sm:$0xff]
    %v442 = vld [vmem:[#allocation3 + $0x90] sm:$0xff]
    %v443 = vld [vmem:[#allocation3 + $0x98] sm:$0xff]
    %v444 = vld [vmem:[#allocation3 + $0xa0] sm:$0xff]
    %v445 = vld [vmem:[#allocation3 + $0xa8] sm:$0xff]
    %v446 = vld [vmem:[#allocation3 + $0xb0] sm:$0xff]
    %v447 = vld [vmem:[#allocation3 + $0xb8] sm:$0x1]
    %v448 = vlaneseq
    %v449 = vshrl.u32 %v448, 7
    %v450 = vsub.s32 0, %v449
    %v451 = vrot.slane %v447, %v450
    %vm452 = vcmask 523264
    %v454 = vsel %vm452, %v438, 0
    %456 = vmatprep.subr.mxu0 0.0
    %457 = vmatpush1.msra.mxu0 0.0
    %458 = vmatprep.subr.mxu0 0.0
    %459 = vmatpush1.msra.mxu0 0.0
    %460 = vmatprep.subr.mxu0 0.0
    %461 = vmatpush1.msra.mxu0 0.0
    %462 = vmatprep.subr.mxu0 0.0
    %463 = vmatpush1.msra.mxu0 0.0
    %464 = vmatprep.subr.mxu0 0.0
    %465 = vmatpush1.msra.mxu0 0.0
    %466 = vmatprep.subr.mxu0 0.0
    %467 = vmatpush1.msra.mxu0 0.0
    %468 = vmatprep.subr.mxu0 0.0
    %469 = vmatpush1.msra.mxu0 0.0
    %470 = vmatprep.subr.mxu0 0.0
    %471 = vmatpush1.msra.mxu0 0.0
    %472 = vmatprep.subr.mxu0 0.0
    %473 = vmatpush1.msra.mxu0 %v446
    %474 = vmatprep.subr.mxu0 0.0
    %475 = vmatpush1.msra.mxu0 %v445
    %476 = vmatprep.subr.mxu0 0.0
    %477 = vmatpush1.msra.mxu0 %v444
    %478 = vmatprep.subr.mxu0 0.0
    %479 = vmatpush1.msra.mxu0 %v443
    %480 = vmatprep.subr.mxu0 0.0
    %481 = vmatpush1.msra.mxu0 %v442
    %482 = vmatprep.subr.mxu0 0.0
    %483 = vmatpush1.msra.mxu0 %v441
    %484 = vmatprep.subr.mxu0 0.0
    %485 = vmatpush1.msra.mxu0 %v440
    %486 = vmatprep.subr.mxu0 0.0
    %487 = vmatpush1.msra.mxu0 %v439
    %488 = vmatprep.subr.mxu0 0.0
    %489 = vmatpush2.msra.mxu0 0.0
    %490 = vmatprep.subr.mxu0 0.0
    %491 = vmatpush2.msra.mxu0 0.0
    %492 = vmatprep.subr.mxu0 0.0
    %493 = vmatpush2.msra.mxu0 0.0
    %494 = vmatprep.subr.mxu0 0.0
    %495 = vmatpush2.msra.mxu0 0.0
    %496 = vmatprep.subr.mxu0 0.0
    %497 = vmatpush2.msra.mxu0 0.0
    %498 = vmatprep.subr.mxu0 0.0
    %499 = vmatpush2.msra.mxu0 0.0
    %500 = vmatprep.subr.mxu0 0.0
    %501 = vmatpush2.msra.mxu0 0.0
    %502 = vmatprep.subr.mxu0 0.0
    %503 = vmatpush2.msra.mxu0 0.0
    %504 = vmatprep.subr.mxu0 0.0
    %505 = vmatpush2.msra.mxu0 0.0
    %506 = vmatprep.subr.mxu0 0.0
    %507 = vmatpush2.msra.mxu0 0.0
    %508 = vmatprep.subr.mxu0 0.0
    %509 = vmatpush2.msra.mxu0 0.0
    %510 = vmatprep.subr.mxu0 0.0
    %511 = vmatpush2.msra.mxu0 0.0
    %512 = vmatprep.subr.mxu0 0.0
    %513 = vmatpush2.msra.mxu0 0.0
    %514 = vmatprep.subr.mxu0 0.0
    %515 = vmatpush2.msra.mxu0 0.0
    %516 = vmatprep.subr.mxu0 0.0
    %517 = vmatpush2.msra.mxu0 0.0
    %518 = vmatprep.subr.mxu0 0.0
    %519 = vmatpush2.msra.mxu0 0.0
    %520 = vmatprep.mubr.f32.mxu0 0.0
    %521 = vmatmul.mubr.f32.gmra.mxu0 %v454
    %v522 = vpop.f32.mrf.mxu0
    %v523 = vadd.f32 %v451, %v522
    %v524 = vpop.f32.mrf.mxu0
    %525 = vdwg.mxu0
    %v526 = vmax.f32 %v523, 0.0
    %527 = vst.msk [vmem:[#allocation2] sm:$0x3] %vm137, %v526
    %v528 = vld [vmem:[%s2] sm:$0x3]
    %530 = vrot.lane.b32.xlu0 %v528, 32
    %v531 = vpop.permute.xlu0 %530
    %533 = vst.msk [vmem:[#allocation2] sm:$0x3] %vm145, %v531
    %v534 = vld [vmem:[#allocation3 + $0xc0] sm:$0xff]
    %v535 = vld [vmem:[#allocation3 + $0xc8] sm:$0xff]
    %v536 = vld [vmem:[#allocation3 + $0xd0] sm:$0xff]
    %v537 = vld [vmem:[#allocation3 + $0xd8] sm:$0xff]
    %v538 = vld [vmem:[#allocation3 + $0xe0] sm:$0xff]
    %v539 = vld [vmem:[#allocation3 + $0xe8] sm:$0xff]
    %v540 = vld [vmem:[#allocation3 + $0xf0] sm:$0xff]
    %v541 = vld [vmem:[#allocation3 + $0xf8] sm:$0xff]
    %v542 = vld [vmem:[#allocation3 + $0x140] sm:$0x1]
    %v543 = vld [vmem:[#allocation2] sm:$0x3]
    %v544 = vlaneseq
    %v545 = vshrl.u32 %v544, 7
    %v546 = vsub.s32 0, %v545
    %v547 = vrot.slane %v542, %v546
    %v549 = vsel %vm452, %v543, 0
    %551 = vmatprep.subr.mxu0 0.0
    %552 = vmatpush1.msra.mxu0 0.0
    %553 = vmatprep.subr.mxu0 0.0
    %554 = vmatpush1.msra.mxu0 0.0
    %555 = vmatprep.subr.mxu0 0.0
    %556 = vmatpush1.msra.mxu0 0.0
    %557 = vmatprep.subr.mxu0 0.0
    %558 = vmatpush1.msra.mxu0 0.0
    %559 = vmatprep.subr.mxu0 0.0
    %560 = vmatpush1.msra.mxu0 0.0
    %561 = vmatprep.subr.mxu0 0.0
    %562 = vmatpush1.msra.mxu0 0.0
    %563 = vmatprep.subr.mxu0 0.0
    %564 = vmatpush1.msra.mxu0 0.0
    %565 = vmatprep.subr.mxu0 0.0
    %566 = vmatpush1.msra.mxu0 0.0
    %567 = vmatprep.subr.mxu0 0.0
    %568 = vmatpush1.msra.mxu0 %v541
    %569 = vmatprep.subr.mxu0 0.0
    %570 = vmatpush1.msra.mxu0 %v540
    %571 = vmatprep.subr.mxu0 0.0
    %572 = vmatpush1.msra.mxu0 %v539
    %573 = vmatprep.subr.mxu0 0.0
    %574 = vmatpush1.msra.mxu0 %v538
    %575 = vmatprep.subr.mxu0 0.0
    %576 = vmatpush1.msra.mxu0 %v537
    %577 = vmatprep.subr.mxu0 0.0
    %578 = vmatpush1.msra.mxu0 %v536
    %579 = vmatprep.subr.mxu0 0.0
    %580 = vmatpush1.msra.mxu0 %v535
    %581 = vmatprep.subr.mxu0 0.0
    %582 = vmatpush1.msra.mxu0 %v534
    %583 = vmatprep.subr.mxu0 0.0
    %584 = vmatpush2.msra.mxu0 0.0
    %585 = vmatprep.subr.mxu0 0.0
    %586 = vmatpush2.msra.mxu0 0.0
    %587 = vmatprep.subr.mxu0 0.0
    %588 = vmatpush2.msra.mxu0 0.0
    %589 = vmatprep.subr.mxu0 0.0
    %590 = vmatpush2.msra.mxu0 0.0
    %591 = vmatprep.subr.mxu0 0.0
    %592 = vmatpush2.msra.mxu0 0.0
    %593 = vmatprep.subr.mxu0 0.0
    %594 = vmatpush2.msra.mxu0 0.0
    %595 = vmatprep.subr.mxu0 0.0
    %596 = vmatpush2.msra.mxu0 0.0
    %597 = vmatprep.subr.mxu0 0.0
    %598 = vmatpush2.msra.mxu0 0.0
    %599 = vmatprep.subr.mxu0 0.0
    %600 = vmatpush2.msra.mxu0 0.0
    %601 = vmatprep.subr.mxu0 0.0
    %602 = vmatpush2.msra.mxu0 0.0
    %603 = vmatprep.subr.mxu0 0.0
    %604 = vmatpush2.msra.mxu0 0.0
    %605 = vmatprep.subr.mxu0 0.0
    %606 = vmatpush2.msra.mxu0 0.0
    %607 = vmatprep.subr.mxu0 0.0
    %608 = vmatpush2.msra.mxu0 0.0
    %609 = vmatprep.subr.mxu0 0.0
    %610 = vmatpush2.msra.mxu0 0.0
    %611 = vmatprep.subr.mxu0 0.0
    %612 = vmatpush2.msra.mxu0 0.0
    %613 = vmatprep.subr.mxu0 0.0
    %614 = vmatpush2.msra.mxu0 0.0
    %615 = vmatprep.mubr.f32.mxu0 0.0
    %616 = vmatmul.mubr.f32.gmra.mxu0 %v549
    %v617 = vpop.f32.mrf.mxu0
    %v618 = vadd.f32 %v547, %v617
    %v619 = vpop.f32.mrf.mxu0
    %620 = vdwg.mxu0
    %v621 = vxor.u32 %v618, 2147483648
    %v622 = vmul.f32 %v621, 1.442695
    %v623 = vpow.pop %v622
    %v624 = vadd.f32 %v623, 1.0
    %v625 = vrcp.pop %v624
    %v626 = vmul.f32 1.0, %v625
    %v627 = vtanh.pop %v618
    %v628 = vld [vmem:[%s3] sm:$0x3]
    %630 = vrot.lane.b32.xlu0 %v628, 32
    %v631 = vpop.permute.xlu0 %630
    %v633 = vmul.f32 %v626, %v631
    %635 = vrot.lane.b32.xlu0 %v627, 64
    %v636 = vpop.permute.xlu0 %635
    %v638 = vmul.f32 %v626, %v636
    %640 = vrot.lane.b32.xlu0 %v638, 32
    %v641 = vpop.permute.xlu0 %640
    %v643 = vadd.f32 %v633, %v641
    %v644 = vtanh.pop %v643
    %646 = vrot.lane.b32.xlu0 %v644, 64
    %v647 = vpop.permute.xlu0 %646
    %v649 = vmul.f32 %v626, %v647
    %651 = vrot.lane.b32.xlu0 %v649, 32
    %v652 = vpop.permute.xlu0 %651
    %654 = vst.msk [vmem:[%s6] sm:$0x3] %vm137, %v652
    %656 = vrot.lane.b32.xlu0 %v643, 96
    %v657 = vpop.permute.xlu0 %656
    %659 = vst.msk [vmem:[%s7] sm:$0x3] %vm137, %v657
    %660 = vst.msk [vmem:[#allocation2] sm:$0x3] %vm137, %v652
    %v661 = vld [vmem:[%s139] sm:$0x3]
    %663 = vrot.lane.b32.xlu0 %v661, 32
    %v664 = vpop.permute.xlu0 %663
    %666 = vst.msk [vmem:[#allocation2] sm:$0x3] %vm145, %v664
    %v667 = vld [vmem:[#allocation3 + $0x100] sm:$0xff]
    %v668 = vld [vmem:[#allocation3 + $0x108] sm:$0xff]
    %v669 = vld [vmem:[#allocation3 + $0x110] sm:$0xff]
    %v670 = vld [vmem:[#allocation3 + $0x118] sm:$0xff]
    %v671 = vld [vmem:[#allocation3 + $0x120] sm:$0xff]
    %v672 = vld [vmem:[#allocation3 + $0x128] sm:$0xff]
    %v673 = vld [vmem:[#allocation3 + $0x130] sm:$0xff]
    %v674 = vld [vmem:[#allocation3 + $0x138] sm:$0xff]
    %v675 = vld [vmem:[#allocation3 + $0x141] sm:$0x1]
    %v676 = vld [vmem:[#allocation2] sm:$0x3]
    %v677 = vlaneseq
    %v678 = vshrl.u32 %v677, 7
    %v679 = vsub.s32 0, %v678
    %v680 = vrot.slane %v675, %v679
    %v682 = vsel %vm452, %v676, 0
    %684 = vmatprep.subr.mxu0 0.0
    %685 = vmatpush1.msra.mxu0 0.0
    %686 = vmatprep.subr.mxu0 0.0
    %687 = vmatpush1.msra.mxu0 0.0
    %688 = vmatprep.subr.mxu0 0.0
    %689 = vmatpush1.msra.mxu0 0.0
    %690 = vmatprep.subr.mxu0 0.0
    %691 = vmatpush1.msra.mxu0 0.0
    %692 = vmatprep.subr.mxu0 0.0
    %693 = vmatpush1.msra.mxu0 0.0
    %694 = vmatprep.subr.mxu0 0.0
    %695 = vmatpush1.msra.mxu0 0.0
    %696 = vmatprep.subr.mxu0 0.0
    %697 = vmatpush1.msra.mxu0 0.0
    %698 = vmatprep.subr.mxu0 0.0
    %699 = vmatpush1.msra.mxu0 0.0
    %700 = vmatprep.subr.mxu0 0.0
    %701 = vmatpush1.msra.mxu0 %v674
    %702 = vmatprep.subr.mxu0 0.0
    %703 = vmatpush1.msra.mxu0 %v673
    %704 = vmatprep.subr.mxu0 0.0
    %705 = vmatpush1.msra.mxu0 %v672
    %706 = vmatprep.subr.mxu0 0.0
    %707 = vmatpush1.msra.mxu0 %v671
    %708 = vmatprep.subr.mxu0 0.0
    %709 = vmatpush1.msra.mxu0 %v670
    %710 = vmatprep.subr.mxu0 0.0
    %711 = vmatpush1.msra.mxu0 %v669
    %712 = vmatprep.subr.mxu0 0.0
    %713 = vmatpush1.msra.mxu0 %v668
    %714 = vmatprep.subr.mxu0 0.0
    %715 = vmatpush1.msra.mxu0 %v667
    %716 = vmatprep.subr.mxu0 0.0
    %717 = vmatpush2.msra.mxu0 0.0
    %718 = vmatprep.subr.mxu0 0.0
    %719 = vmatpush2.msra.mxu0 0.0
    %720 = vmatprep.subr.mxu0 0.0
    %721 = vmatpush2.msra.mxu0 0.0
    %722 = vmatprep.subr.mxu0 0.0
    %723 = vmatpush2.msra.mxu0 0.0
    %724 = vmatprep.subr.mxu0 0.0
    %725 = vmatpush2.msra.mxu0 0.0
    %726 = vmatprep.subr.mxu0 0.0
    %727 = vmatpush2.msra.mxu0 0.0
    %728 = vmatprep.subr.mxu0 0.0
    %729 = vmatpush2.msra.mxu0 0.0
    %730 = vmatprep.subr.mxu0 0.0
    %731 = vmatpush2.msra.mxu0 0.0
    %732 = vmatprep.subr.mxu0 0.0
    %733 = vmatpush2.msra.mxu0 0.0
    %734 = vmatprep.subr.mxu0 0.0
    %735 = vmatpush2.msra.mxu0 0.0
    %736 = vmatprep.subr.mxu0 0.0
    %737 = vmatpush2.msra.mxu0 0.0
    %738 = vmatprep.subr.mxu0 0.0
    %739 = vmatpush2.msra.mxu0 0.0
    %740 = vmatprep.subr.mxu0 0.0
    %741 = vmatpush2.msra.mxu0 0.0
    %742 = vmatprep.subr.mxu0 0.0
    %743 = vmatpush2.msra.mxu0 0.0
    %744 = vmatprep.subr.mxu0 0.0
    %745 = vmatpush2.msra.mxu0 0.0
    %746 = vmatprep.subr.mxu0 0.0
    %747 = vmatpush2.msra.mxu0 0.0
    %748 = vmatprep.mubr.f32.mxu0 0.0
    %749 = vmatmul.mubr.f32.gmra.mxu0 %v682
    %v750 = vpop.f32.mrf.mxu0
    %v751 = vadd.f32 %v680, %v750
    %v752 = vpop.f32.mrf.mxu0
    %753 = vdwg.mxu0
    %v754 = vxor.u32 %v751, 2147483648
    %v755 = vmul.f32 %v754, 1.442695
    %v756 = vpow.pop %v755
    %v757 = vadd.f32 %v756, 1.0
    %v758 = vrcp.pop %v757
    %v759 = vmul.f32 1.0, %v758
    %v760 = vtanh.pop %v751
    %v761 = vld [vmem:[%s147] sm:$0x3]
    %763 = vrot.lane.b32.xlu0 %v761, 32
    %v764 = vpop.permute.xlu0 %763
    %v766 = vmul.f32 %v759, %v764
    %768 = vrot.lane.b32.xlu0 %v760, 64
    %v769 = vpop.permute.xlu0 %768
    %v771 = vmul.f32 %v759, %v769
    %773 = vrot.lane.b32.xlu0 %v771, 32
    %v774 = vpop.permute.xlu0 %773
    %v776 = vadd.f32 %v766, %v774
    %v777 = vtanh.pop %v776
    %779 = vrot.lane.b32.xlu0 %v777, 64
    %v780 = vpop.permute.xlu0 %779
    %v782 = vmul.f32 %v759, %v780
    %784 = vrot.lane.b32.xlu0 %v782, 32
    %v785 = vpop.permute.xlu0 %784
    %s787 = scalar_lea.vmem %s6, 2
    %788 = vst.msk [vmem:[%s787] sm:$0x3] %vm137, %v785
    %790 = vrot.lane.b32.xlu0 %v776, 96
    %v791 = vpop.permute.xlu0 %790
    %s793 = scalar_lea.vmem %s7, 2
    %794 = vst.msk [vmem:[%s793] sm:$0x3] %vm137, %v791
    %v795 = vld [vmem:[#allocation3 + $0x148] sm:$0xff]
    %v796 = vld [vmem:[#allocation3 + $0x150] sm:$0xff]
    %v797 = vld [vmem:[#allocation3 + $0x158] sm:$0xff]
    %v798 = vld [vmem:[#allocation3 + $0x160] sm:$0xff]
    %v799 = vld [vmem:[#allocation3 + $0x168] sm:$0x1]
    %v800 = vlaneseq
    %v801 = vshrl.u32 %v800, 7
    %v802 = vsub.s32 0, %v801
    %v803 = vrot.slane %v799, %v802
    %vm804 = vcmask 261120
    %v805 = vsel %vm804, %v785, 0
    %807 = vmatprep.subr.mxu0 0.0
    %808 = vmatpush1.msra.mxu0 0.0
    %809 = vmatprep.subr.mxu0 0.0
    %810 = vmatpush1.msra.mxu0 0.0
    %811 = vmatprep.subr.mxu0 0.0
    %812 = vmatpush1.msra.mxu0 0.0
    %813 = vmatprep.subr.mxu0 0.0
    %814 = vmatpush1.msra.mxu0 0.0
    %815 = vmatprep.subr.mxu0 0.0
    %816 = vmatpush1.msra.mxu0 0.0
    %817 = vmatprep.subr.mxu0 0.0
    %818 = vmatpush1.msra.mxu0 0.0
    %819 = vmatprep.subr.mxu0 0.0
    %820 = vmatpush1.msra.mxu0 0.0
    %821 = vmatprep.subr.mxu0 0.0
    %822 = vmatpush1.msra.mxu0 0.0
    %823 = vmatprep.subr.mxu0 0.0
    %824 = vmatpush1.msra.mxu0 0.0
    %825 = vmatprep.subr.mxu0 0.0
    %826 = vmatpush1.msra.mxu0 0.0
    %827 = vmatprep.subr.mxu0 0.0
    %828 = vmatpush1.msra.mxu0 0.0
    %829 = vmatprep.subr.mxu0 0.0
    %830 = vmatpush1.msra.mxu0 0.0
    %831 = vmatprep.subr.mxu0 0.0
    %832 = vmatpush1.msra.mxu0 %v798
    %833 = vmatprep.subr.mxu0 0.0
    %834 = vmatpush1.msra.mxu0 %v797
    %835 = vmatprep.subr.mxu0 0.0
    %836 = vmatpush1.msra.mxu0 %v796
    %837 = vmatprep.subr.mxu0 0.0
    %838 = vmatpush1.msra.mxu0 %v795
    %839 = vmatprep.subr.mxu0 0.0
    %840 = vmatpush2.msra.mxu0 0.0
    %841 = vmatprep.subr.mxu0 0.0
    %842 = vmatpush2.msra.mxu0 0.0
    %843 = vmatprep.subr.mxu0 0.0
    %844 = vmatpush2.msra.mxu0 0.0
    %845 = vmatprep.subr.mxu0 0.0
    %846 = vmatpush2.msra.mxu0 0.0
    %847 = vmatprep.subr.mxu0 0.0
    %848 = vmatpush2.msra.mxu0 0.0
    %849 = vmatprep.subr.mxu0 0.0
    %850 = vmatpush2.msra.mxu0 0.0
    %851 = vmatprep.subr.mxu0 0.0
    %852 = vmatpush2.msra.mxu0 0.0
    %853 = vmatprep.subr.mxu0 0.0
    %854 = vmatpush2.msra.mxu0 0.0
    %855 = vmatprep.subr.mxu0 0.0
    %856 = vmatpush2.msra.mxu0 0.0
    %857 = vmatprep.subr.mxu0 0.0
    %858 = vmatpush2.msra.mxu0 0.0
    %859 = vmatprep.subr.mxu0 0.0
    %860 = vmatpush2.msra.mxu0 0.0
    %861 = vmatprep.subr.mxu0 0.0
    %862 = vmatpush2.msra.mxu0 0.0
    %863 = vmatprep.subr.mxu0 0.0
    %864 = vmatpush2.msra.mxu0 0.0
    %865 = vmatprep.subr.mxu0 0.0
    %866 = vmatpush2.msra.mxu0 0.0
    %867 = vmatprep.subr.mxu0 0.0
    %868 = vmatpush2.msra.mxu0 0.0
    %869 = vmatprep.subr.mxu0 0.0
    %870 = vmatpush2.msra.mxu0 0.0
    %871 = vmatprep.mubr.f32.mxu0 0.0
    %872 = vmatmul.mubr.f32.gmra.mxu0 %v805
    %v873 = vpop.f32.mrf.mxu0
    %v874 = vadd.f32 %v803, %v873
    %v875 = vpop.f32.mrf.mxu0
    %876 = vdwg.mxu0
    %877 = vst [vmem:[#allocation8] sm:$0x3] %v874
    // Predicated region
    $region30: #{decoder_attention_lstm_step.1} parent=1 // pred_check
      _
    $region31: #{decoder_attention_lstm_step.1} parent=1 // pred_check_branch
      %879 = sbr.rel (0) target = $region33
    $region32: #{decoder_attention_lstm_step.1} parent=1 // pred_region
      %s881 = ssub.s32 32, 32
      %882 = vsyncadd [#allocation5], %s881
      %s884 = sshll.u32 [#allocation8], 4
      %s885 = int_to_ptr.vmem [resolvable:$true] %s884
      %887 = dma.vmem_to_hbm [thread:$0]  %s885, 32, %s5, [#allocation5]
    $region33: #{decoder_attention_lstm_step.1} parent=1 // pred_fallthru
      _
    // Predicated region
    $region34: #{decoder_attention_lstm_step.1} parent=1 // pred_check
      _
    $region35: #{decoder_attention_lstm_step.1} parent=1 // pred_check_branch
      %889 = sbr.rel (0) target = $region37
    $region36: #{decoder_attention_lstm_step.1} parent=1 // pred_region
      _
    $region37: #{decoder_attention_lstm_step.1} parent=1 // pred_fallthru
      _
    // Predicated region
    $region38: #{decoder_attention_lstm_step.1} parent=1 // pred_check
      _
    $region39: #{decoder_attention_lstm_step.1} parent=1 // pred_check_branch
      %891 = sbr.rel (0) target = $region41
    $region40: #{decoder_attention_lstm_step.1} parent=1 // pred_region
      _
    $region41: #{decoder_attention_lstm_step.1} parent=1 // pred_fallthru
      _
    // Predicated region
    $region42: #{decoder_attention_lstm_step.1} parent=1 // pred_check
      _
    $region43: #{decoder_attention_lstm_step.1} parent=1 // pred_check_branch
      %893 = sbr.rel (0) target = $region45
    $region44: #{decoder_attention_lstm_step.1} parent=1 // pred_region
      %894 = dma.done [#allocation5], 32
    $region45: #{decoder_attention_lstm_step.1} parent=1 // pred_fallthru
      _
    // Predicated region
    $region46: #{decoder_attention_lstm_step.1} parent=1 // pred_check
      _
    $region47: #{decoder_attention_lstm_step.1} parent=1 // pred_check_branch
      %896 = sbr.rel (0) target = $region49
    $region48: #{decoder_attention_lstm_step.1} parent=1 // pred_region
      _
    $region49: #{decoder_attention_lstm_step.1} parent=1 // pred_fallthru
      _
    // Predicated region
    $region50: #{decoder_attention_lstm_step.1} parent=1 // pred_check
      _
    $region51: #{decoder_attention_lstm_step.1} parent=1 // pred_check_branch
      %898 = sbr.rel (0) target = $region53
    $region52: #{decoder_attention_lstm_step.1} parent=1 // pred_region
      _
    $region53: #{decoder_attention_lstm_step.1} parent=1 // pred_fallthru
      _
    %899 = vsyncpa [#allocation4], 1
    %900 = vsyncpa [#allocation7], 1
    %901 = vsyncpa [#allocation5], 1

</llo_original>
